<compile_context>
chip_gen: v5e
topology: v5e:2x2
jax: 0.10.0
libtpu: 0.0.40
codegen_flags: <defaults>
</compile_context>

<pallas_src>
import jax
import jax.numpy as jnp
from jax.experimental import pallas as pl
from jax.experimental.pallas import tpu as pltpu


def _relu_kernel(x_ref, o_ref):
    # Elementwise max(x, 0); no zeros_like broadcast materialized.
    o_ref[...] = jnp.maximum(x_ref[...], 0)


def _ceil_to(n: int, m: int) -> int:
    return -(-n // m) * m


def _choose_layout(total: int, itemsize: int, target_block_bytes: int):
    """Pick (lane_width, tile_rows, padded_rows) for a flat array of `total` elems.

    Prefers a layout that needs no padding at all; otherwise minimizes the
    one-time pad.  Ties broken toward bigger blocks, then wider lanes.
    """
    sub = max(8, 32 // itemsize)  # sublane packing: 8 f32, 16 bf16, 32 int8/fp8
    best_key, best_cfg = None, None
    for lanes in (2048, 1024, 512, 256, 128):
        rows_needed = _ceil_to(_ceil_to(total, lanes) // lanes, sub)
        tr_cap = max(sub, (target_block_bytes // (lanes * itemsize)) // sub * sub)
        tr = min(tr_cap, rows_needed)
        padded_rows = _ceil_to(rows_needed, tr)
        pad_elems = padded_rows * lanes - total
        key = (pad_elems, -(tr * lanes), -lanes)
        if best_key is None or key < best_key:
            best_key, best_cfg = key, (lanes, tr, padded_rows)
    return best_cfg


def relu(x: jax.Array, *, target_block_bytes: int = 2 * 1024 * 1024) -> jax.Array:
    """Elementwise ReLU implemented with a Pallas TPU kernel."""
    orig_shape = x.shape
    dtype = x.dtype
    total = x.size
    if total == 0:
        return x

    itemsize = jnp.dtype(dtype).itemsize
    lanes, tr, padded_rows = _choose_layout(total, itemsize, target_block_bytes)
    padded_total = padded_rows * lanes

    x_flat = x.reshape(-1)
    if padded_total != total:
        # One-time pad up to a whole number of (tr, lanes) tiles.
        x_flat = jnp.pad(x_flat, (0, padded_total - total))
    x2d = x_flat.reshape(padded_rows, lanes)

    out2d = pl.pallas_call(
        _relu_kernel,
        out_shape=jax.ShapeDtypeStruct((padded_rows, lanes), dtype),
        grid=(padded_rows // tr,),
        in_specs=[pl.BlockSpec((tr, lanes), lambda i: (i, 0))],
        out_specs=pl.BlockSpec((tr, lanes), lambda i: (i, 0)),
        compiler_params=pltpu.CompilerParams(
            dimension_semantics=("parallel",),
        ),
        cost_estimate=pl.CostEstimate(
            flops=total,
            transcendentals=0,
            bytes_accessed=2 * total * itemsize,
        ),
    )(x2d)

    if padded_total != total:
        out_flat = out2d.reshape(-1)[:total]
    else:
        out_flat = out2d.reshape(-1)
    return out_flat.reshape(orig_shape)


if __name__ == "__main__":
    key = jax.random.PRNGKey(0)

    # Primary check: NCHW f32 input (batch=2, channels=4, spatial=16x16).
    x = jax.random.normal(key, (2, 4, 16, 16), dtype=jnp.float32)
    y = relu(x)
    jax.block_until_ready(y)
    y_ref = jnp.maximum(jnp.zeros_like(x), x)
    assert y.shape == x.shape and y.dtype == x.dtype
    assert bool(jnp.allclose(y, y_ref)), "Pallas ReLU mismatch vs reference (f32)"

    # Pad-path check: awkward element count that is not a tile multiple.
    x_odd = jax.random.normal(jax.random.PRNGKey(1), (3, 5, 7, 11), dtype=jnp.float32)
    y_odd = relu(x_odd)
    jax.block_until_ready(y_odd)
    assert bool(jnp.allclose(y_odd, jnp.maximum(jnp.zeros_like(x_odd), x_odd))), \
        "Pallas ReLU mismatch vs reference (padded path)"

    # Dtype-aware tiling check: bf16 uses (16, 128) packing granularity.
    x_bf16 = jax.random.normal(jax.random.PRNGKey(2), (2, 4, 16, 16)).astype(jnp.bfloat16)
    y_bf16 = relu(x_bf16)
    jax.block_until_ready(y_bf16)
    assert y_bf16.dtype == jnp.bfloat16
    assert bool(jnp.all(y_bf16 == jnp.maximum(jnp.zeros_like(x_bf16), x_bf16))), \
        "Pallas ReLU mismatch vs reference (bf16)"

    print("KERNEL_OK")
</pallas_src>

<mosaic_0001>
module attributes {stable_mosaic.version = 11 : i64} {
  func.func @_relu_kernel(%arg0: i32, %arg1: memref<8x256xf32, #tpu.memory_space<vmem>>, %arg2: memref<8x256xf32, #tpu.memory_space<vmem>>) attributes {dimension_semantics = [#tpu.dimension_semantics<parallel>], iteration_bounds = array<i64: 1>, scalar_prefetch = 0 : i64, scratch_operands = 0 : i64, tpu.core_type = #tpu.core_type<tc>, window_params = [{transform_indices = @transform_0, window_bounds = array<i64: 8, 256>}, {transform_indices = @transform_1, window_bounds = array<i64: 8, 256>}]} {
    %c0 = arith.constant 0 : index
    %c0_0 = arith.constant 0 : index
    %0 = vector.load %arg1[%c0, %c0_0] : memref<8x256xf32, #tpu.memory_space<vmem>>, vector<8x256xf32>
    %cst = arith.constant 0.000000e+00 : f32
    %1 = vector.broadcast %cst : f32 to vector<8x256xf32>
    %2 = arith.maximumf %0, %1 : vector<8x256xf32>
    %c0_1 = arith.constant 0 : index
    %c0_2 = arith.constant 0 : index
    %3 = vector.load %arg2[%c0_1, %c0_2] : memref<8x256xf32, #tpu.memory_space<vmem>>, vector<8x256xf32>
    tpu.vector_store %arg2[%c0_1, %c0_2], %2 {strides = array<i32>} : memref<8x256xf32, #tpu.memory_space<vmem>>, vector<8x256xf32>,
    return
  }
  func.func @transform_0(%arg0: i32) -> (i32, i32) {
    %c0_i32 = arith.constant 0 : i32
    %c0_i32_0 = arith.constant 0 : i32
    return %arg0, %c0_i32 : i32, i32
  }
  func.func @transform_1(%arg0: i32) -> (i32, i32) {
    %c0_i32 = arith.constant 0 : i32
    %c0_i32_0 = arith.constant 0 : i32
    return %arg0, %c0_i32 : i32, i32
  }
}

</mosaic_0001>

<llo_original>
// kernel: tpu_custom_call.1
$region0: #{tpu_custom_call.1}
  #allocation0 [shape = 'u32[]', space=smem, size = 0x4, offset = 0x4, fixed_abs, tag = 'smem constant byte address 0x4 - core index']
  #allocation1 [shape = 'u32[72,128]{1,0:T(1,128)}', space=vmem, size = 0x9000, scoped, tag = 'internal scratch']
  %s0 = inlined_call_operand.hbm [shape: f32[8,256], index: 0, kind: input, shape index: {}]
  %s1 = inlined_call_operand.hbm [shape: f32[8,256], index: 1, kind: output, shape index: {}]
  %s2 = sld [smem:[#allocation0]]
  $region18: #{tpu_custom_call.1} parent=0
    _
  %s4 = ssub.s32 1, %s2
  %s5 = scalar_select 0, %s4, %s2
  $region1: #{tpu_custom_call.1} parent=0
    #allocation2 [shape = 'u8[8192]{0}', space=vmem, size = 0x2000, scoped, tag = 'input window, operand 0, single buffered']
    #allocation3 [shape = 's32[1]{0}', space=sflag, size = 0x4, scoped, tag = 'scoped memory for tpu_custom_call.1']
    #allocation4 [shape = 's32[1]{0}', space=sflag, size = 0x4, scoped, tag = 'scoped memory for tpu_custom_call.1']
    #allocation5 [shape = 'u8[8192]{0}', space=vmem, size = 0x2000, scoped, tag = 'output window, operand 0, single buffered']
    %6 = vsyncpa [#allocation3], 0
    %7 = vsyncpa [#allocation4], 0
    // Predicated region
    $region2: #{tpu_custom_call.1} parent=1 // pred_check
      _
    $region3: #{tpu_custom_call.1} parent=1 // pred_check_branch
      %9 = sbr.rel (0) target = $region5
    $region4: #{tpu_custom_call.1} parent=1 // pred_region
      %11 = vsyncadd [#allocation3], 0
      %s13 = sshll.u32 %s0, 4
      %s14 = int_to_ptr.hbm [resolvable:$true] %s13
      %s15 = sshll.u32 [#allocation2], 4
      %s16 = int_to_ptr.vmem [resolvable:$true] %s15
      %18 = dma.hbm_to_vmem [thread:$0]  %s14, 256, %s16, [#allocation3]
    $region5: #{tpu_custom_call.1} parent=1 // pred_fallthru
      _
    // Predicated region
    $region6: #{tpu_custom_call.1} parent=1 // pred_check
      _
    $region7: #{tpu_custom_call.1} parent=1 // pred_check_branch
      %20 = sbr.rel (0) target = $region9
    $region8: #{tpu_custom_call.1} parent=1 // pred_region
      %22 = dma.done [#allocation3], 256
    $region9: #{tpu_custom_call.1} parent=1 // pred_fallthru
      _
    %v23 = vld [vmem:[#allocation2] sm:$0xff]
    %v24 = vld [vmem:[#allocation2 + $0x8] sm:$0xff]
    %v25 = vmax.f32 %v23, 0.0
    %v26 = vmax.f32 %v24, 0.0
    %27 = vst [vmem:[#allocation5] sm:$0xff] %v25
    %28 = vst [vmem:[#allocation5 + $0x8] sm:$0xff] %v26
    // Predicated region
    $region10: #{tpu_custom_call.1} parent=1 // pred_check
      _
    $region11: #{tpu_custom_call.1} parent=1 // pred_check_branch
      %30 = sbr.rel (0) target = $region13
    $region12: #{tpu_custom_call.1} parent=1 // pred_region
      %32 = vsyncadd [#allocation4], 0
      %s34 = sshll.u32 [#allocation5], 4
      %s35 = int_to_ptr.vmem [resolvable:$true] %s34
      %s36 = sshll.u32 %s1, 4
      %s37 = int_to_ptr.hbm [resolvable:$true] %s36
      %39 = dma.vmem_to_hbm [thread:$0]  %s35, 256, %s37, [#allocation4]
    $region13: #{tpu_custom_call.1} parent=1 // pred_fallthru
      _
    // Predicated region
    $region14: #{tpu_custom_call.1} parent=1 // pred_check
      _
    $region15: #{tpu_custom_call.1} parent=1 // pred_check_branch
      %41 = sbr.rel (0) target = $region17
    $region16: #{tpu_custom_call.1} parent=1 // pred_region
      %43 = dma.done [#allocation4], 256
    $region17: #{tpu_custom_call.1} parent=1 // pred_fallthru
      _
    %44 = vsyncpa [#allocation3], 1
    %45 = vsyncpa [#allocation4], 1

</llo_original>
